<compile_context>
chip_gen: v5e
topology: v5e:2x2
jax: 0.10.0
libtpu: 0.0.40
codegen_flags: <defaults>
</compile_context>

<pallas_src>
import functools

import jax
import jax.numpy as jnp
from jax.experimental import pallas as pl
from jax.experimental.pallas import tpu as pltpu


def _wmse_kernel(truth_ref, pred_ref, w_ref, out_ref, acc_ref, *,
                 n_rows, needs_mask):
    i = pl.program_id(1)

    # Zero the vector accumulator at the start of each partial reduction.
    @pl.when(i == 0)
    def _():
        acc_ref[...] = jnp.zeros_like(acc_ref)

    t = truth_ref[...].astype(jnp.float32)   # truth.float()
    p = pred_ref[...].astype(jnp.float32)
    w = w_ref[...]                            # (1, d_lane), already sqrt'd

    # Preserve PyTorch's op order: scale predict and truth separately, diff.
    d = p * w - t * w
    sq = d * d

    if needs_mask:
        # Mask rows past the logical batch end (partial last block and clamped
        # duplicate blocks). select() -> stale/NaN VMEM garbage never leaks.
        tile_rows = truth_ref.shape[0]
        blk = pl.program_id(0) * pl.num_programs(1) + i
        row0 = blk * tile_rows
        local = jax.lax.broadcasted_iota(jnp.int32, (tile_rows, 1), 0)
        sq = jnp.where(row0 + local < n_rows, sq, 0.0)

    acc_ref[...] += sq                        # pure VPU work per grid step

    # Single cross-lane/sublane reduce per partial, on the last inner step.
    @pl.when(i == pl.num_programs(1) - 1)
    def _():
        out_ref[0, 0] = jnp.sum(acc_ref[...])


def weight_mse_loss(truth, predict, weights=None, *, target_tile_bytes=2 << 20):
    """Pallas implementation of WeightMSELoss.forward.

    truth, predict: (B, D) arrays (any float dtype; cast to f32 in-register).
    weights: optional (D,) raw weights (sqrt applied here, like __init__).
    Returns a float32 scalar.
    """
    truth = jnp.asarray(truth)
    predict = jnp.asarray(predict)
    assert truth.ndim == 2 and predict.shape == truth.shape
    B, D = truth.shape

    if weights is None:
        w = jnp.ones((D,), dtype=jnp.float32)
    else:
        w = jnp.sqrt(jnp.asarray(weights, dtype=jnp.float32))

    # ---- choose a lane-dense layout --------------------------------------
    if D % 128 == 0:
        x_t, x_p, w_row, d_lane = truth, predict, w, D
    elif 128 % D == 0:
        # Flatten (B, D) -> (rows, 128). The weight pattern has period D which
        # divides 128, so one tiled 128-lane weight row covers every row.
        rep = 128 // D
        n = B * D
        pad = (-n) % 128
        flat_t = truth.reshape(-1)
        flat_p = predict.reshape(-1)
        if pad:  # tiny tail pad (< 128 elems); zeros contribute exactly 0
            flat_t = jnp.pad(flat_t, (0, pad))
            flat_p = jnp.pad(flat_p, (0, pad))
        x_t = flat_t.reshape(-1, 128)
        x_p = flat_p.reshape(-1, 128)
        w_row = jnp.tile(w, rep)
        d_lane = 128
    else:
        # Fallback: full-D lane block (legal: equals the full array dim).
        x_t, x_p, w_row, d_lane = truth, predict, w, D

    rows = x_t.shape[0]
    if rows == 0:
        return jnp.zeros((), jnp.float32)

    # ---- tile sizing (dtype-aware sublane minimum, VMEM-budgeted) ---------
    itemsizes = [jnp.dtype(x_t.dtype).itemsize, jnp.dtype(x_p.dtype).itemsize]
    min_rows = max(8, 32 // min(itemsizes))          # f32:8, bf16:16, int8:32
    if rows <= min_rows:
        tile_rows = rows                             # block == full dim: legal
    else:
        budget_rows = target_tile_bytes // (d_lane * max(itemsizes))
        rows_down = (rows // min_rows) * min_rows    # keeps block starts in bounds
        tile_rows = max(min_rows,
                        min((budget_rows // min_rows) * min_rows, rows_down))
    tile_rows = int(tile_rows)

    # ---- split blocks over a 2-way "parallel" axis (megacore on v7x) ------
    n_blocks = -(-rows // tile_rows)
    n_parallel = 2 if n_blocks >= 2 else 1
    n_inner = -(-n_blocks // n_parallel)
    needs_mask = (n_blocks * tile_rows != rows) or (n_parallel * n_inner != n_blocks)

    last_block = n_blocks - 1
    if n_parallel * n_inner == n_blocks:
        row_map = lambda p, i: (p * n_inner + i, 0)
    else:
        # Grid steps past the last valid block re-read it; their rows are
        # fully masked in-kernel, so they contribute exactly zero.
        row_map = lambda p, i: (jnp.minimum(p * n_inner + i, last_block), 0)

    w2d = w_row.reshape(1, d_lane)

    # Explicit VMEM budget: 2 inputs x 2 pipeline buffers + f32 accumulator.
    in_tile_bytes = sum(tile_rows * d_lane * s for s in itemsizes)
    vmem_needed = 2 * in_tile_bytes + tile_rows * d_lane * 4 + 2 * d_lane * 4
    vmem_limit = int(min(32 << 20,
                         max(16 << 20, int(vmem_needed * 1.5) + (1 << 20))))

    kernel = functools.partial(_wmse_kernel, n_rows=rows, needs_mask=needs_mask)

    partials = pl.pallas_call(
        kernel,
        out_shape=jax.ShapeDtypeStruct((n_parallel, 1), jnp.float32),
        grid_spec=pltpu.PrefetchScalarGridSpec(
            num_scalar_prefetch=0,
            grid=(n_parallel, n_inner),
            in_specs=[
                pl.BlockSpec((tile_rows, d_lane), row_map),
                pl.BlockSpec((tile_rows, d_lane), row_map),
                pl.BlockSpec((1, d_lane), lambda p, i: (0, 0)),
            ],
            out_specs=pl.BlockSpec((1, 1), lambda p, i: (p, 0),
                                   memory_space=pltpu.SMEM),
            scratch_shapes=[pltpu.VMEM((tile_rows, d_lane), jnp.float32)],
        ),
        compiler_params=pltpu.CompilerParams(
            dimension_semantics=("parallel", "arbitrary"),
            vmem_limit_bytes=vmem_limit,
        ),
    )(x_t, x_p, w2d)

    return jnp.sum(partials)


if __name__ == "__main__":
    key = jax.random.PRNGKey(0)
    k1, k2, k3 = jax.random.split(key, 3)

    # Small (batch, features) shape implied by the module's forward.
    B, D = 16, 32
    truth = jax.random.normal(k1, (B, D), dtype=jnp.float32)
    predict = jax.random.normal(k2, (B, D), dtype=jnp.float32)
    weights = jax.random.uniform(k3, (D,), dtype=jnp.float32) + 0.5  # positive

    # Weighted path (exercises the lane-dense flatten branch for D=32).
    loss = jax.block_until_ready(weight_mse_loss(truth, predict, weights))
    wref = jnp.sqrt(weights)
    ref = jnp.sum((predict * wref - truth * wref) ** 2)
    assert jnp.allclose(loss, ref, rtol=1e-4, atol=1e-5), (loss, ref)

    # weights=None path.
    loss_nw = jax.block_until_ready(weight_mse_loss(truth, predict, None))
    ref_nw = jnp.sum((predict - truth) ** 2)
    assert jnp.allclose(loss_nw, ref_nw, rtol=1e-4, atol=1e-5), (loss_nw, ref_nw)

    # Lane-aligned (D % 128 == 0), ragged bf16 batch -> exercises in-kernel row
    # masking (no HBM padding copy) and the 2-way parallel split.
    B2, D2 = 100, 128
    t2 = jax.random.normal(k1, (B2, D2), dtype=jnp.bfloat16)
    p2 = jax.random.normal(k2, (B2, D2), dtype=jnp.bfloat16)
    w2 = jax.random.uniform(k3, (D2,), dtype=jnp.float32) + 0.5
    loss2 = jax.block_until_ready(weight_mse_loss(t2, p2, w2))
    ws2 = jnp.sqrt(w2)
    ref2 = jnp.sum((p2.astype(jnp.float32) * ws2 - t2.astype(jnp.float32) * ws2) ** 2)
    assert jnp.allclose(loss2, ref2, rtol=1e-3, atol=1e-2), (loss2, ref2)

    # Multi-block grid with a clamped (fully masked) trailing step: forces the
    # jnp.minimum index map + masking path across several tiles.
    B3, D3 = 200, 128
    t3 = jax.random.normal(k1, (B3, D3), dtype=jnp.float32)
    p3 = jax.random.normal(k2, (B3, D3), dtype=jnp.float32)
    w3 = jax.random.uniform(k3, (D3,), dtype=jnp.float32) + 0.5
    loss3 = jax.block_until_ready(
        weight_mse_loss(t3, p3, w3, target_tile_bytes=8192))
    ws3 = jnp.sqrt(w3)
    ref3 = jnp.sum((p3 * ws3 - t3 * ws3) ** 2)
    assert jnp.allclose(loss3, ref3, rtol=1e-4, atol=1e-3), (loss3, ref3)

    print("KERNEL_OK")
</pallas_src>

<mosaic_0001>
module attributes {stable_mosaic.version = 11 : i64} {
  func.func @_wmse_kernel(%arg0: i32, %arg1: i32, %arg2: memref<4x128xf32, #tpu.memory_space<vmem>>, %arg3: memref<4x128xf32, #tpu.memory_space<vmem>>, %arg4: memref<1x128xf32, #tpu.memory_space<vmem>>, %arg5: memref<1x1xf32, #tpu.memory_space<smem>>, %arg6: memref<4x128xf32, #tpu.memory_space<vmem>>) attributes {dimension_semantics = [#tpu.dimension_semantics<parallel>, #tpu.dimension_semantics<arbitrary>], iteration_bounds = array<i64: 1, 1>, scalar_prefetch = 0 : i64, scratch_operands = 1 : i64, tpu.core_type = #tpu.core_type<tc>, window_params = [{transform_indices = @transform_0, window_bounds = array<i64: 4, 128>}, {transform_indices = @transform_1, window_bounds = array<i64: 4, 128>}, {pipeline_mode = #tpu.pipeline_mode<synchronous>, transform_indices = @transform_2, window_bounds = array<i64: 1, 128>}, {transform_indices = @transform_3, window_bounds = array<i64: 1, 1>}]} {
    %c0_i32 = arith.constant 0 : i32
    %0 = arith.cmpi eq, %arg1, %c0_i32 : i32
    %1 = arith.extui %0 : i1 to i32
    %c0_i32_0 = arith.constant 0 : i32
    %2 = arith.cmpi ne, %1, %c0_i32_0 : i32
    scf.if %2 {
      %cst = arith.constant 0.000000e+00 : f32
      %18 = vector.broadcast %cst : f32 to vector<4x128xf32>
      %c0_12 = arith.constant 0 : index
      %c0_13 = arith.constant 0 : index
      %19 = vector.load %arg6[%c0_12, %c0_13] : memref<4x128xf32, #tpu.memory_space<vmem>>, vector<4x128xf32>
      tpu.vector_store %arg6[%c0_12, %c0_13], %18 {strides = array<i32>} : memref<4x128xf32, #tpu.memory_space<vmem>>, vector<4x128xf32>,
    } else {
    }
    %c0 = arith.constant 0 : index
    %c0_1 = arith.constant 0 : index
    %3 = vector.load %arg2[%c0, %c0_1] : memref<4x128xf32, #tpu.memory_space<vmem>>, vector<4x128xf32>
    %c0_2 = arith.constant 0 : index
    %c0_3 = arith.constant 0 : index
    %4 = vector.load %arg3[%c0_2, %c0_3] : memref<4x128xf32, #tpu.memory_space<vmem>>, vector<4x128xf32>
    %c0_4 = arith.constant 0 : index
    %c0_5 = arith.constant 0 : index
    %5 = vector.load %arg4[%c0_4, %c0_5] : memref<1x128xf32, #tpu.memory_space<vmem>>, vector<1x128xf32>
    %6 = vector.broadcast %5 : vector<1x128xf32> to vector<4x128xf32>
    %7 = arith.mulf %4, %6 : vector<4x128xf32>
    %8 = vector.broadcast %5 : vector<1x128xf32> to vector<4x128xf32>
    %9 = arith.mulf %3, %8 : vector<4x128xf32>
    %10 = arith.subf %7, %9 : vector<4x128xf32>
    %11 = arith.mulf %10, %10 : vector<4x128xf32>
    %c0_6 = arith.constant 0 : index
    %c0_7 = arith.constant 0 : index
    %12 = vector.load %arg6[%c0_6, %c0_7] : memref<4x128xf32, #tpu.memory_space<vmem>>, vector<4x128xf32>
    %13 = arith.addf %12, %11 : vector<4x128xf32>
    %c0_8 = arith.constant 0 : index
    %c0_9 = arith.constant 0 : index
    %14 = vector.load %arg6[%c0_8, %c0_9] : memref<4x128xf32, #tpu.memory_space<vmem>>, vector<4x128xf32>
    tpu.vector_store %arg6[%c0_8, %c0_9], %13 {strides = array<i32>} : memref<4x128xf32, #tpu.memory_space<vmem>>, vector<4x128xf32>,
    %c0_i32_10 = arith.constant 0 : i32
    %15 = arith.cmpi eq, %arg1, %c0_i32_10 : i32
    %16 = arith.extui %15 : i1 to i32
    %c0_i32_11 = arith.constant 0 : i32
    %17 = arith.cmpi ne, %16, %c0_i32_11 : i32
    scf.if %17 {
      %c0_12 = arith.constant 0 : index
      %c0_13 = arith.constant 0 : index
      %18 = vector.load %arg6[%c0_12, %c0_13] : memref<4x128xf32, #tpu.memory_space<vmem>>, vector<4x128xf32>
      %19 = vector.shape_cast %18 : vector<4x128xf32> to vector<1x4x128xf32>
      %cst = arith.constant dense<0.000000e+00> : vector<1xf32>
      %20 = vector.multi_reduction <add>, %19, %cst [1, 2] : vector<1x4x128xf32> to vector<1xf32>
      %21 = vector.shape_cast %20 : vector<1xf32> to vector<1x1x1xf32>
      %22 = vector.extract %21[0, 0, 0] : f32 from vector<1x1x1xf32>
      %c0_14 = arith.constant 0 : index
      %c0_15 = arith.constant 0 : index
      %23 = memref.load %arg5[%c0_14, %c0_15] : memref<1x1xf32, #tpu.memory_space<smem>>
      memref.store %22, %arg5[%c0_14, %c0_15] : memref<1x1xf32, #tpu.memory_space<smem>>
    } else {
    }
    return
  }
  func.func @transform_0(%arg0: i32, %arg1: i32) -> (i32, i32) {
    %c1_i32 = arith.constant 1 : i32
    %0 = arith.muli %arg0, %c1_i32 : i32
    %1 = arith.addi %0, %arg1 : i32
    %c0_i32 = arith.constant 0 : i32
    %c0_i32_0 = arith.constant 0 : i32
    return %1, %c0_i32 : i32, i32
  }
  func.func @transform_1(%arg0: i32, %arg1: i32) -> (i32, i32) {
    %c1_i32 = arith.constant 1 : i32
    %0 = arith.muli %arg0, %c1_i32 : i32
    %1 = arith.addi %0, %arg1 : i32
    %c0_i32 = arith.constant 0 : i32
    %c0_i32_0 = arith.constant 0 : i32
    return %1, %c0_i32 : i32, i32
  }
  func.func @transform_2(%arg0: i32, %arg1: i32) -> (i32, i32) {
    %c0_i32 = arith.constant 0 : i32
    %c0_i32_0 = arith.constant 0 : i32
    %c0_i32_1 = arith.constant 0 : i32
    return %c0_i32, %c0_i32_0 : i32, i32
  }
  func.func @transform_3(%arg0: i32, %arg1: i32) -> (i32, i32) {
    %c0_i32 = arith.constant 0 : i32
    %c0_i32_0 = arith.constant 0 : i32
    return %arg0, %c0_i32 : i32, i32
  }
}

</mosaic_0001>

<llo_original>
// kernel: tpu_custom_call.1
$region0: #{tpu_custom_call.1}
  #allocation0 [shape = 'u32[]', space=smem, size = 0x4, offset = 0x4, fixed_abs, tag = 'smem constant byte address 0x4 - core index']
  #allocation1 [shape = 'u32[72,128]{1,0:T(1,128)}', space=vmem, size = 0x9000, scoped, tag = 'internal scratch']
  #allocation2 [shape = 'f32[4,128]{1,0:T(4,128)}', space=vmem, size = 0x800, scoped, tag = 'scratch operand']
  %s0 = inlined_call_operand.hbm [shape: f32[4,128], index: 0, kind: input, shape index: {}]
  %s1 = inlined_call_operand.hbm [shape: f32[4,128], index: 1, kind: input, shape index: {}]
  %s2 = inlined_call_operand.vmem [shape: f32[1,128], index: 2, kind: input, shape index: {}]
  %s3 = inlined_call_operand.hbm [shape: f32[1,1], index: 3, kind: output, shape index: {}]
  %s4 = sld [smem:[#allocation0]]
  $region38: #{tpu_custom_call.1} parent=0
    _
  %s6 = ssub.s32 1, %s4
  %s7 = scalar_select 0, %s6, %s4
  $region1: #{tpu_custom_call.1} parent=0
    #allocation3 [shape = 'u8[2048]{0}', space=vmem, size = 0x800, scoped, tag = 'input window, operand 0, single buffered']
    #allocation4 [shape = 's32[1]{0}', space=sflag, size = 0x4, scoped, tag = 'scoped memory for tpu_custom_call.1']
    #allocation5 [shape = 's32[1]{0}', space=sflag, size = 0x4, scoped, tag = 'scoped memory for tpu_custom_call.1']
    #allocation6 [shape = 'u8[2048]{0}', space=vmem, size = 0x800, scoped, tag = 'input window, operand 1, single buffered']
    #allocation7 [shape = 's32[1]{0}', space=sflag, size = 0x4, scoped, tag = 'scoped memory for tpu_custom_call.1']
    #allocation8 [shape = 'u8[512]{0}', space=smem, size = 0x200, scoped, tag = 'output window, operand 0, single buffered']
    %8 = vsyncpa [#allocation4], 0
    %9 = vsyncpa [#allocation7], 0
    %10 = vsyncpa [#allocation5], 0
    // Predicated region
    $region2: #{tpu_custom_call.1} parent=1 // pred_check
      _
    $region3: #{tpu_custom_call.1} parent=1 // pred_check_branch
      %12 = sbr.rel (0) target = $region5
    $region4: #{tpu_custom_call.1} parent=1 // pred_region
      %s13 = sadd.s32 0, 0
      %15 = vsyncadd [#allocation4], 0
      %s16 = smul.addr %s13, 4
      %s17 = scalar_lea.hbm %s0, %s16
      %s19 = sshll.u32 %s17, 4
      %s20 = int_to_ptr.hbm [resolvable:$true] %s19
      %s21 = sshll.u32 [#allocation3], 4
      %s22 = int_to_ptr.vmem [resolvable:$true] %s21
      %24 = dma.hbm_to_vmem [thread:$0]  %s20, 64, %s22, [#allocation4]
    $region5: #{tpu_custom_call.1} parent=1 // pred_fallthru
      _
    // Predicated region
    $region6: #{tpu_custom_call.1} parent=1 // pred_check
      _
    $region7: #{tpu_custom_call.1} parent=1 // pred_check_branch
      %26 = sbr.rel (0) target = $region9
    $region8: #{tpu_custom_call.1} parent=1 // pred_region
      %s27 = sadd.s32 0, 0
      %29 = vsyncadd [#allocation7], 0
      %s30 = smul.addr %s27, 4
      %s31 = scalar_lea.hbm %s1, %s30
      %s33 = sshll.u32 %s31, 4
      %s34 = int_to_ptr.hbm [resolvable:$true] %s33
      %s35 = sshll.u32 [#allocation6], 4
      %s36 = int_to_ptr.vmem [resolvable:$true] %s35
      %38 = dma.hbm_to_vmem [thread:$0]  %s34, 64, %s36, [#allocation7]
    $region9: #{tpu_custom_call.1} parent=1 // pred_fallthru
      _
    // Predicated region
    $region10: #{tpu_custom_call.1} parent=1 // pred_check
      _
    $region11: #{tpu_custom_call.1} parent=1 // pred_check_branch
      %40 = sbr.rel (0) target = $region13
    $region12: #{tpu_custom_call.1} parent=1 // pred_region
      _
    $region13: #{tpu_custom_call.1} parent=1 // pred_fallthru
      _
    // Predicated region
    $region14: #{tpu_custom_call.1} parent=1 // pred_check
      _
    $region15: #{tpu_custom_call.1} parent=1 // pred_check_branch
      %42 = sbr.rel (0) target = $region17
    $region16: #{tpu_custom_call.1} parent=1 // pred_region
      %44 = dma.done [#allocation4], 64
    $region17: #{tpu_custom_call.1} parent=1 // pred_fallthru
      _
    // Predicated region
    $region18: #{tpu_custom_call.1} parent=1 // pred_check
      _
    $region19: #{tpu_custom_call.1} parent=1 // pred_check_branch
      %46 = sbr.rel (0) target = $region21
    $region20: #{tpu_custom_call.1} parent=1 // pred_region
      %48 = dma.done [#allocation7], 64
    $region21: #{tpu_custom_call.1} parent=1 // pred_fallthru
      _
    %s49 = sadd.s32 0, 0
    %s50 = sadd.s32 0, 0
    %p51 = scmp.eq.s32.totalorder 0, 0
    // Predicated region
    $region22: #{tpu_custom_call.1} parent=1 // pred_check
      %p52 = pneg %p51
    $region23: #{tpu_custom_call.1} parent=1 // pred_check_branch
      %54 = sbr.rel (%p52) target = $region25
    $region24: #{tpu_custom_call.1} parent=1 // pred_region
      %55 = vst [vmem:[#allocation2] sm:$0xf] 0.0
    $region25: #{tpu_custom_call.1} parent=1 // pred_fallthru
      _
    %v56 = vld [vmem:[#allocation3] sm:$0xf]
    %v57 = vld [vmem:[#allocation6] sm:$0xf]
    %v58 = vld [vmem:[%s2] sm:$0x1]
    %v60 = vperm.slane %v58, 0
    %v62 = vmul.f32 %v57, %v60
    %v63 = vmul.f32 %v56, %v60
    %v64 = vsub.f32 %v62, %v63
    %v65 = vmul.f32 %v64, %v64
    %v66 = vld [vmem:[#allocation2] sm:$0xf]
    %v67 = vadd.f32 %v66, %v65
    %68 = vst [vmem:[#allocation2] sm:$0xf] %v67
    // Predicated region
    $region26: #{tpu_custom_call.1} parent=1 // pred_check
      %p69 = pneg %p51
    $region27: #{tpu_custom_call.1} parent=1 // pred_check_branch
      %71 = sbr.rel (%p69) target = $region29
    $region28: #{tpu_custom_call.1} parent=1 // pred_region
      %v72 = vld [vmem:[#allocation2] sm:$0xf]
      %vm73 = vcmask 1043456
      %v74 = vsel %vm73, %v72, 0.0
      %75 = vadd.xlane.f32.xlu0 %v74
      %v76 = vpop.xlane.xlu0 %75
      %v77 = vrot.slane %v76, 4
      %v78 = vadd.f32 %v76, %v77
      %v79 = vrot.slane %v78, 2
      %v80 = vadd.f32 %v78, %v79
      %v81 = vrot.slane %v80, 1
      %v82 = vadd.f32 %v80, %v81
      %s83 = vtos %v82
      %s84 = scalar_lea.smem [#allocation8], 0
      %85 = sst [smem:[%s84]] %s83
    $region29: #{tpu_custom_call.1} parent=1 // pred_fallthru
      _
    // Predicated region
    $region30: #{tpu_custom_call.1} parent=1 // pred_check
      _
    $region31: #{tpu_custom_call.1} parent=1 // pred_check_branch
      %87 = sbr.rel (0) target = $region33
    $region32: #{tpu_custom_call.1} parent=1 // pred_region
      %89 = vsyncadd [#allocation5], 0
      %s91 = sshll.u32 %s3, 4
      %s92 = int_to_ptr.hbm [resolvable:$true] %s91
      %94 = dma.smem_to_hbm [#allocation8], 16, %s92, [#allocation5]
    $region33: #{tpu_custom_call.1} parent=1 // pred_fallthru
      _
    // Predicated region
    $region34: #{tpu_custom_call.1} parent=1 // pred_check
      _
    $region35: #{tpu_custom_call.1} parent=1 // pred_check_branch
      %96 = sbr.rel (0) target = $region37
    $region36: #{tpu_custom_call.1} parent=1 // pred_region
      %98 = dma.done [#allocation5], 16
    $region37: #{tpu_custom_call.1} parent=1 // pred_fallthru
      _
    %99 = sfence
    %100 = vsyncpa [#allocation4], 1
    %101 = vsyncpa [#allocation7], 1
    %102 = vsyncpa [#allocation5], 1

</llo_original>
